<compile_context>
chip_gen: v6e
topology: v6e:2x2x1
jax: 0.10.0
libtpu: 0.0.40
codegen_flags: <defaults>
</compile_context>

<pallas_src>
import jax
import jax.numpy as jnp
from jax.experimental import pallas as pl
from jax.experimental.pallas import tpu as pltpu


def _pick_tile(dim, preferred, align):
    """Largest multiple of `align` that divides `dim` and is <= `preferred`; else full dim."""
    if dim <= preferred or dim % align != 0:
        return dim
    t = (preferred // align) * align
    while t >= align:
        if dim % t == 0:
            return t
        t -= align
    return dim


def _vmem_limit(tile_bytes):
    limit = int(tile_bytes * 1.5) + (4 << 20)      # headroom for pipeline bookkeeping
    return max(16 << 20, min(limit, 64 << 20))     # stay under the v7x 64 MiB ceiling


# ---------------------------------------------------------------------------
# Flat path: out[m] = x[m] @ w + hb_rows[m]        (per-row fused bias)
# ---------------------------------------------------------------------------
def _flat_kernel(x_ref, w_ref, hb_ref, o_ref, acc_ref):
    # x_ref: (TM, TK)  w_ref: (TK, TN)  hb_ref: (TM, TN)  o_ref: (TM, TN)  acc_ref: (TM, TN) f32
    k = pl.program_id(2)

    @pl.when(k == 0)
    def _():
        acc_ref[...] = jnp.zeros_like(acc_ref)

    acc_ref[...] += jnp.dot(x_ref[...], w_ref[...], preferred_element_type=jnp.float32)

    @pl.when(k == pl.num_programs(2) - 1)
    def _():
        o_ref[...] = (acc_ref[...] + hb_ref[...].astype(jnp.float32)).astype(o_ref.dtype)


def _matmul_rowbias(x, w, hb_rows):
    """x: (M, K), w: (K, D), hb_rows: (M, D) -> (M, D)."""
    M, K = x.shape
    dim_out = w.shape[1]

    pad_o = (-dim_out) % 128                       # lane-dense output stores
    if pad_o:
        w = jnp.pad(w, ((0, 0), (0, pad_o)))
        hb_rows = jnp.pad(hb_rows, ((0, 0), (0, pad_o)))
    dop = dim_out + pad_o

    # TODO(synk): M not a multiple of 8 (and too large to tile) falls back to one full-M block.
    tm = _pick_tile(M, 256, 8)
    tn = _pick_tile(dop, 512, 128)
    tk = _pick_tile(K, 512, 128)
    grid = (M // tm, dop // tn, K // tk)

    itemsize = max(x.dtype.itemsize, 2)
    tile_bytes = 2 * (tm * tk + tk * tn + 2 * tm * tn) * itemsize + tm * tn * 4

    out = pl.pallas_call(
        _flat_kernel,
        out_shape=jax.ShapeDtypeStruct((M, dop), x.dtype),
        grid_spec=pltpu.PrefetchScalarGridSpec(
            num_scalar_prefetch=0,
            grid=grid,
            in_specs=[
                pl.BlockSpec((tm, tk), lambda i, j, k: (i, k)),   # x tile
                pl.BlockSpec((tk, tn), lambda i, j, k: (k, j)),   # weight tile
                pl.BlockSpec((tm, tn), lambda i, j, k: (i, j)),   # fused per-row bias
            ],
            out_specs=pl.BlockSpec((tm, tn), lambda i, j, k: (i, j)),
            scratch_shapes=[pltpu.VMEM((tm, tn), jnp.float32)],
        ),
        compiler_params=pltpu.CompilerParams(
            dimension_semantics=("parallel", "parallel", "arbitrary"),
            vmem_limit_bytes=_vmem_limit(tile_bytes),
        ),
    )(x, w, hb_rows)

    return out[:, :dim_out] if pad_o else out


# ---------------------------------------------------------------------------
# Batched path: out[b, n] = x[b, n] @ w + hb[b]    (per-batch fused bias)
# ---------------------------------------------------------------------------
def _batched_kernel(x_ref, w_ref, hb_ref, o_ref, acc_ref):
    # x_ref: (1, TM, TK)  w_ref: (TK, TN)  hb_ref: (1, TN)  o_ref: (1, TM, TN)
    k = pl.program_id(3)

    @pl.when(k == 0)
    def _():
        acc_ref[...] = jnp.zeros_like(acc_ref)

    acc_ref[...] += jnp.dot(x_ref[0], w_ref[...], preferred_element_type=jnp.float32)

    @pl.when(k == pl.num_programs(3) - 1)
    def _():
        o_ref[0] = (acc_ref[...] + hb_ref[...].astype(jnp.float32)).astype(o_ref.dtype)


def _matmul_batchbias(x, w, hb):
    """x: (B, N, K), w: (K, D), hb: (B, D) -> (B, N, D)."""
    B, N, K = x.shape
    dim_out = w.shape[1]

    pad_o = (-dim_out) % 128
    if pad_o:
        w = jnp.pad(w, ((0, 0), (0, pad_o)))
        hb = jnp.pad(hb, ((0, 0), (0, pad_o)))
    dop = dim_out + pad_o

    tm = _pick_tile(N, 256, 8)
    tn = _pick_tile(dop, 512, 128)
    tk = _pick_tile(K, 512, 128)
    grid = (B, N // tm, dop // tn, K // tk)

    itemsize = max(x.dtype.itemsize, 2)
    tile_bytes = 2 * (tm * tk + tk * tn + tn + tm * tn) * itemsize + tm * tn * 4

    out = pl.pallas_call(
        _batched_kernel,
        out_shape=jax.ShapeDtypeStruct((B, N, dop), x.dtype),
        grid_spec=pltpu.PrefetchScalarGridSpec(
            num_scalar_prefetch=0,
            grid=grid,
            in_specs=[
                pl.BlockSpec((1, tm, tk), lambda b, i, j, k: (b, i, k)),  # x tile
                pl.BlockSpec((tk, tn), lambda b, i, j, k: (k, j)),        # weight tile
                pl.BlockSpec((1, tn), lambda b, i, j, k: (b, j)),         # fused per-batch bias
            ],
            out_specs=pl.BlockSpec((1, tm, tn), lambda b, i, j, k: (b, i, j)),
            scratch_shapes=[pltpu.VMEM((tm, tn), jnp.float32)],
        ),
        compiler_params=pltpu.CompilerParams(
            dimension_semantics=("parallel", "parallel", "parallel", "arbitrary"),
            vmem_limit_bytes=_vmem_limit(tile_bytes),
        ),
    )(x, w, hb)

    return out[..., :dim_out] if pad_o else out


# ---------------------------------------------------------------------------
# Public forward
# ---------------------------------------------------------------------------
def concat_linear_v2(context, x, w, b, wh, compute_dtype=None):
    """ConcatLinear_v2 forward.

    context: (B, 1+dim_c); x: (B, N, dim_in) or (B, dim_in).
    w:  (dim_in, dim_out)     pre-transposed nn.Linear weight
    b:  (dim_out,)            nn.Linear bias
    wh: (1+dim_c, dim_out)    pre-transposed hyper-bias weight
    compute_dtype: optionally cast x / w (e.g. jnp.bfloat16) for the MXU; accumulation
    and the bias add stay in f32.
    """
    # Fold hyper-bias + linear bias into one (B, dim_out) tensor with a tiny XLA matmul.
    hb = jnp.dot(context, wh, preferred_element_type=jnp.float32) + b.astype(jnp.float32)

    if compute_dtype is not None:
        x = x.astype(compute_dtype)
        w = w.astype(compute_dtype)

    if x.ndim == 2:
        # 2-D path: B is the M axis of a plain row-tiled matmul; hb is already per-row.
        return _matmul_rowbias(x, w, hb)

    B, N, dim_in = x.shape
    if N < 128:
        # Too few rows per batch to fill the MXU: flatten (B, N) into one M axis and
        # replicate the per-batch bias per row (rows stay batch-major, so alignment holds).
        out = _matmul_rowbias(x.reshape(B * N, dim_in), w, jnp.repeat(hb, N, axis=0))
        return out.reshape(B, N, -1)

    return _matmul_batchbias(x, w, hb)


if __name__ == "__main__":
    B, N = 2, 8
    dim_in, dim_out, dim_c = 32, 32, 4

    key = jax.random.PRNGKey(0)
    k_ctx, k_x, k_w, k_b, k_wh, k_x3 = jax.random.split(key, 6)

    bound_w = 1.0 / (dim_in ** 0.5)
    bound_h = 1.0 / ((1 + dim_c) ** 0.5)
    w = jax.random.uniform(k_w, (dim_in, dim_out), jnp.float32, -bound_w, bound_w)
    b = jax.random.uniform(k_b, (dim_out,), jnp.float32, -bound_w, bound_w)
    wh = jax.random.uniform(k_wh, (1 + dim_c, dim_out), jnp.float32, -bound_h, bound_h)

    context = jax.random.normal(k_ctx, (B, 1 + dim_c), jnp.float32)

    # 3-D x, small sequence -> flattened-M path.
    x = jax.random.normal(k_x, (B, N, dim_in), jnp.float32)
    out = jax.block_until_ready(concat_linear_v2(context, x, w, b, wh))
    ref = x @ w + b + (context @ wh)[:, None, :]
    assert out.shape == (B, N, dim_out)
    assert jnp.allclose(out, ref, atol=1e-5, rtol=1e-5)

    # 2-D x path (B as the M axis).
    x2 = jax.random.normal(k_x, (B, dim_in), jnp.float32)
    out2 = jax.block_until_ready(concat_linear_v2(context, x2, w, b, wh))
    ref2 = x2 @ w + b + context @ wh
    assert out2.shape == (B, dim_out)
    assert jnp.allclose(out2, ref2, atol=1e-5, rtol=1e-5)

    # 3-D x, longer sequence -> per-batch tiled path (exercises the 4-D grid kernel).
    N_big = 128
    x3 = jax.random.normal(k_x3, (B, N_big, dim_in), jnp.float32)
    out3 = jax.block_until_ready(concat_linear_v2(context, x3, w, b, wh))
    ref3 = x3 @ w + b + (context @ wh)[:, None, :]
    assert out3.shape == (B, N_big, dim_out)
    assert jnp.allclose(out3, ref3, atol=1e-5, rtol=1e-5)

    print("KERNEL_OK")
</pallas_src>

<mosaic_0001>
module attributes {stable_mosaic.version = 11 : i64} {
  func.func @_flat_kernel(%arg0: i32, %arg1: i32, %arg2: i32, %arg3: memref<16x32xf32, #tpu.memory_space<vmem>>, %arg4: memref<32x128xf32, #tpu.memory_space<vmem>>, %arg5: memref<16x128xf32, #tpu.memory_space<vmem>>, %arg6: memref<16x128xf32, #tpu.memory_space<vmem>>, %arg7: memref<16x128xf32, #tpu.memory_space<vmem>>) attributes {dimension_semantics = [#tpu.dimension_semantics<parallel>, #tpu.dimension_semantics<parallel>, #tpu.dimension_semantics<arbitrary>], iteration_bounds = array<i64: 1, 1, 1>, scalar_prefetch = 0 : i64, scratch_operands = 1 : i64, tpu.core_type = #tpu.core_type<tc>, window_params = [{transform_indices = @transform_0, window_bounds = array<i64: 16, 32>}, {transform_indices = @transform_1, window_bounds = array<i64: 32, 128>}, {transform_indices = @transform_2, window_bounds = array<i64: 16, 128>}, {transform_indices = @transform_3, window_bounds = array<i64: 16, 128>}]} {
    %c0_i32 = arith.constant 0 : i32
    %0 = arith.cmpi eq, %arg2, %c0_i32 : i32
    %1 = arith.extui %0 : i1 to i32
    %c0_i32_0 = arith.constant 0 : i32
    %2 = arith.cmpi ne, %1, %c0_i32_0 : i32
    scf.if %2 {
      %cst_10 = arith.constant 0.000000e+00 : f32
      %12 = vector.broadcast %cst_10 : f32 to vector<16x128xf32>
      %c0_11 = arith.constant 0 : index
      %c0_12 = arith.constant 0 : index
      %13 = vector.load %arg7[%c0_11, %c0_12] : memref<16x128xf32, #tpu.memory_space<vmem>>, vector<16x128xf32>
      tpu.vector_store %arg7[%c0_11, %c0_12], %12 {strides = array<i32>} : memref<16x128xf32, #tpu.memory_space<vmem>>, vector<16x128xf32>,
    } else {
    }
    %c0 = arith.constant 0 : index
    %c0_1 = arith.constant 0 : index
    %3 = vector.load %arg7[%c0, %c0_1] : memref<16x128xf32, #tpu.memory_space<vmem>>, vector<16x128xf32>
    %c0_2 = arith.constant 0 : index
    %c0_3 = arith.constant 0 : index
    %4 = vector.load %arg3[%c0_2, %c0_3] : memref<16x32xf32, #tpu.memory_space<vmem>>, vector<16x32xf32>
    %c0_4 = arith.constant 0 : index
    %c0_5 = arith.constant 0 : index
    %5 = vector.load %arg4[%c0_4, %c0_5] : memref<32x128xf32, #tpu.memory_space<vmem>>, vector<32x128xf32>
    %cst = arith.constant dense<0.000000e+00> : vector<16x128xf32>
    %6 = tpu.matmul %4, %5, %cst {dimension_numbers = #tpu.dot_dimension_numbers<[1], [0], [0], [1], [0, 0, 1, 1], [], []>} : vector<16x32xf32>, vector<32x128xf32>, vector<16x128xf32> -> vector<16x128xf32>
    %7 = arith.addf %3, %6 : vector<16x128xf32>
    %c0_6 = arith.constant 0 : index
    %c0_7 = arith.constant 0 : index
    %8 = vector.load %arg7[%c0_6, %c0_7] : memref<16x128xf32, #tpu.memory_space<vmem>>, vector<16x128xf32>
    tpu.vector_store %arg7[%c0_6, %c0_7], %7 {strides = array<i32>} : memref<16x128xf32, #tpu.memory_space<vmem>>, vector<16x128xf32>,
    %c0_i32_8 = arith.constant 0 : i32
    %9 = arith.cmpi eq, %arg2, %c0_i32_8 : i32
    %10 = arith.extui %9 : i1 to i32
    %c0_i32_9 = arith.constant 0 : i32
    %11 = arith.cmpi ne, %10, %c0_i32_9 : i32
    scf.if %11 {
      %c0_10 = arith.constant 0 : index
      %c0_11 = arith.constant 0 : index
      %12 = vector.load %arg7[%c0_10, %c0_11] : memref<16x128xf32, #tpu.memory_space<vmem>>, vector<16x128xf32>
      %c0_12 = arith.constant 0 : index
      %c0_13 = arith.constant 0 : index
      %13 = vector.load %arg5[%c0_12, %c0_13] : memref<16x128xf32, #tpu.memory_space<vmem>>, vector<16x128xf32>
      %14 = arith.addf %12, %13 : vector<16x128xf32>
      %c0_14 = arith.constant 0 : index
      %c0_15 = arith.constant 0 : index
      %15 = vector.load %arg6[%c0_14, %c0_15] : memref<16x128xf32, #tpu.memory_space<vmem>>, vector<16x128xf32>
      tpu.vector_store %arg6[%c0_14, %c0_15], %14 {strides = array<i32>} : memref<16x128xf32, #tpu.memory_space<vmem>>, vector<16x128xf32>,
    } else {
    }
    return
  }
  func.func @transform_0(%arg0: i32, %arg1: i32, %arg2: i32) -> (i32, i32) {
    %c0_i32 = arith.constant 0 : i32
    return %arg0, %arg2 : i32, i32
  }
  func.func @transform_1(%arg0: i32, %arg1: i32, %arg2: i32) -> (i32, i32) {
    %c0_i32 = arith.constant 0 : i32
    return %arg2, %arg1 : i32, i32
  }
  func.func @transform_2(%arg0: i32, %arg1: i32, %arg2: i32) -> (i32, i32) {
    %c0_i32 = arith.constant 0 : i32
    return %arg0, %arg1 : i32, i32
  }
  func.func @transform_3(%arg0: i32, %arg1: i32, %arg2: i32) -> (i32, i32) {
    %c0_i32 = arith.constant 0 : i32
    return %arg0, %arg1 : i32, i32
  }
}

</mosaic_0001>

<llo_original>
// kernel: tpu_custom_call.1
$region0: #{tpu_custom_call.1}
  #allocation0 [shape = 'u32[]', space=smem, size = 0x4, offset = 0x4, fixed_abs, tag = 'smem constant byte address 0x4 - core index']
  #allocation1 [shape = 'u32[144,128]{1,0:T(1,128)}', space=vmem, size = 0x12000, scoped, tag = 'internal scratch']
  #allocation2 [shape = 'f32[16,128]{1,0:T(8,128)}', space=vmem, size = 0x2000, scoped, tag = 'scratch operand']
  %s0 = inlined_call_operand.hbm [shape: f32[16,32], index: 0, kind: input, shape index: {}]
  %s1 = inlined_call_operand.hbm [shape: f32[32,128], index: 1, kind: input, shape index: {}]
  %s2 = inlined_call_operand.hbm [shape: f32[16,128], index: 2, kind: input, shape index: {}]
  %s3 = inlined_call_operand.hbm [shape: f32[16,128], index: 3, kind: output, shape index: {}]
  %s4 = sld [smem:[#allocation0]]
  $region42: #{tpu_custom_call.1} parent=0
    _
  %s6 = ssub.s32 1, %s4
  %s7 = scalar_select 0, %s6, %s4
  $region1: #{tpu_custom_call.1} parent=0
    #allocation3 [shape = 'u8[8192]{0}', space=vmem, size = 0x2000, scoped, tag = 'input window, operand 0, single buffered']
    #allocation4 [shape = 's32[1]{0}', space=sflag, size = 0x4, scoped, tag = 'scoped memory for tpu_custom_call.1']
    #allocation5 [shape = 's32[1]{0}', space=sflag, size = 0x4, scoped, tag = 'scoped memory for tpu_custom_call.1']
    #allocation6 [shape = 'u8[16384]{0}', space=vmem, size = 0x4000, scoped, tag = 'input window, operand 1, single buffered']
    #allocation7 [shape = 's32[1]{0}', space=sflag, size = 0x4, scoped, tag = 'scoped memory for tpu_custom_call.1']
    #allocation8 [shape = 'u8[8192]{0}', space=vmem, size = 0x2000, scoped, tag = 'input window, operand 2, single buffered']
    #allocation9 [shape = 'u8[8192]{0}', space=vmem, size = 0x2000, scoped, tag = 'output window, operand 0, single buffered']
    %8 = vsyncpa [#allocation4], 0
    %9 = vsyncpa [#allocation7], 0
    %10 = vsyncpa [#allocation5], 0
    // Predicated region
    $region2: #{tpu_custom_call.1} parent=1 // pred_check
      _
    $region3: #{tpu_custom_call.1} parent=1 // pred_check_branch
      %12 = sbr.rel (0) target = $region5
    $region4: #{tpu_custom_call.1} parent=1 // pred_region
      %s14 = ssub.s32 256, 256
      %15 = vsyncadd [#allocation4], %s14
      %s16 = sshll.u32 [#allocation3], 4
      %s17 = int_to_ptr.vmem [resolvable:$true] %s16
      %22 = dma.hbm_to_vmem [thread:$0]  %s0, 256, %s17, [#allocation4], 128, 128, 8
    $region5: #{tpu_custom_call.1} parent=1 // pred_fallthru
      _
    // Predicated region
    $region6: #{tpu_custom_call.1} parent=1 // pred_check
      _
    $region7: #{tpu_custom_call.1} parent=1 // pred_check_branch
      %24 = sbr.rel (0) target = $region9
    $region8: #{tpu_custom_call.1} parent=1 // pred_region
      %s26 = ssub.s32 512, 512
      %27 = vsyncadd [#allocation7], %s26
      %s28 = sshll.u32 [#allocation6], 4
      %s29 = int_to_ptr.vmem [resolvable:$true] %s28
      %34 = dma.hbm_to_vmem [thread:$0]  %s1, 512, %s29, [#allocation7], 128, 128, 8
    $region9: #{tpu_custom_call.1} parent=1 // pred_fallthru
      _
    // Predicated region
    $region10: #{tpu_custom_call.1} parent=1 // pred_check
      _
    $region11: #{tpu_custom_call.1} parent=1 // pred_check_branch
      %36 = sbr.rel (0) target = $region13
    $region12: #{tpu_custom_call.1} parent=1 // pred_region
      %s38 = ssub.s32 256, 256
      %39 = vsyncadd [#allocation7], %s38
      %s40 = sshll.u32 [#allocation8], 4
      %s41 = int_to_ptr.vmem [resolvable:$true] %s40
      %46 = dma.hbm_to_vmem [thread:$0]  %s2, 256, %s41, [#allocation7], 128, 128, 8
    $region13: #{tpu_custom_call.1} parent=1 // pred_fallthru
      _
    // Predicated region
    $region14: #{tpu_custom_call.1} parent=1 // pred_check
      _
    $region15: #{tpu_custom_call.1} parent=1 // pred_check_branch
      %48 = sbr.rel (0) target = $region17
    $region16: #{tpu_custom_call.1} parent=1 // pred_region
      %49 = dma.done [#allocation4], 256
    $region17: #{tpu_custom_call.1} parent=1 // pred_fallthru
      _
    // Predicated region
    $region18: #{tpu_custom_call.1} parent=1 // pred_check
      _
    $region19: #{tpu_custom_call.1} parent=1 // pred_check_branch
      %51 = sbr.rel (0) target = $region21
    $region20: #{tpu_custom_call.1} parent=1 // pred_region
      %52 = dma.done [#allocation7], 512
    $region21: #{tpu_custom_call.1} parent=1 // pred_fallthru
      _
    // Predicated region
    $region22: #{tpu_custom_call.1} parent=1 // pred_check
      _
    $region23: #{tpu_custom_call.1} parent=1 // pred_check_branch
      %54 = sbr.rel (0) target = $region25
    $region24: #{tpu_custom_call.1} parent=1 // pred_region
      %55 = dma.done [#allocation7], 256
    $region25: #{tpu_custom_call.1} parent=1 // pred_fallthru
      _
    %p56 = scmp.eq.s32.totalorder 0, 0
    // Predicated region
    $region26: #{tpu_custom_call.1} parent=1 // pred_check
      %p57 = pneg %p56
    $region27: #{tpu_custom_call.1} parent=1 // pred_check_branch
      %59 = sbr.rel (%p57) target = $region29
    $region28: #{tpu_custom_call.1} parent=1 // pred_region
      %60 = vst [vmem:[#allocation2] sm:$0xff] 0.0
      %61 = vst [vmem:[#allocation2 + $0x8] sm:$0xff] 0.0
    $region29: #{tpu_custom_call.1} parent=1 // pred_fallthru
      _
    %v62 = vld [vmem:[#allocation2] sm:$0xff]
    %v63 = vld [vmem:[#allocation2 + $0x8] sm:$0xff]
    %v64 = vld [vmem:[#allocation3] sm:$0xff]
    %v65 = vld [vmem:[#allocation3 + $0x8] sm:$0xff]
    %v66 = vld [vmem:[#allocation6] sm:$0xff]
    %v67 = vld [vmem:[#allocation6 + $0x8] sm:$0xff]
    %v68 = vld [vmem:[#allocation6 + $0x10] sm:$0xff]
    %v69 = vld [vmem:[#allocation6 + $0x18] sm:$0xff]
    %vm70 = vcmask 261120
    %v72 = vsel %vm70, %v64, 0
    %v75 = vsel %vm70, %v65, 0
    %77 = vmatprep.subr.mxu0 0.0
    %78 = vmatpush1.msra.mxu0 0.0
    %79 = vmatprep.subr.mxu0 0.0
    %80 = vmatpush1.msra.mxu0 0.0
    %81 = vmatprep.subr.mxu0 0.0
    %82 = vmatpush1.msra.mxu0 0.0
    %83 = vmatprep.subr.mxu0 0.0
    %84 = vmatpush1.msra.mxu0 0.0
    %85 = vmatprep.subr.mxu0 0.0
    %86 = vmatpush1.msra.mxu0 0.0
    %87 = vmatprep.subr.mxu0 0.0
    %88 = vmatpush1.msra.mxu0 0.0
    %89 = vmatprep.subr.mxu0 0.0
    %90 = vmatpush1.msra.mxu0 0.0
    %91 = vmatprep.subr.mxu0 0.0
    %92 = vmatpush1.msra.mxu0 0.0
    %93 = vmatprep.subr.mxu0 0.0
    %94 = vmatpush1.msra.mxu0 0.0
    %95 = vmatprep.subr.mxu0 0.0
    %96 = vmatpush1.msra.mxu0 0.0
    %97 = vmatprep.subr.mxu0 0.0
    %98 = vmatpush1.msra.mxu0 0.0
    %99 = vmatprep.subr.mxu0 0.0
    %100 = vmatpush1.msra.mxu0 0.0
    %101 = vmatprep.subr.mxu0 0.0
    %102 = vmatpush1.msra.mxu0 %v69
    %103 = vmatprep.subr.mxu0 0.0
    %104 = vmatpush1.msra.mxu0 %v68
    %105 = vmatprep.subr.mxu0 0.0
    %106 = vmatpush1.msra.mxu0 %v67
    %107 = vmatprep.subr.mxu0 0.0
    %108 = vmatpush1.msra.mxu0 %v66
    %109 = vmatprep.subr.mxu0 0.0
    %110 = vmatpush2.msra.mxu0 0.0
    %111 = vmatprep.subr.mxu0 0.0
    %112 = vmatpush2.msra.mxu0 0.0
    %113 = vmatprep.subr.mxu0 0.0
    %114 = vmatpush2.msra.mxu0 0.0
    %115 = vmatprep.subr.mxu0 0.0
    %116 = vmatpush2.msra.mxu0 0.0
    %117 = vmatprep.subr.mxu0 0.0
    %118 = vmatpush2.msra.mxu0 0.0
    %119 = vmatprep.subr.mxu0 0.0
    %120 = vmatpush2.msra.mxu0 0.0
    %121 = vmatprep.subr.mxu0 0.0
    %122 = vmatpush2.msra.mxu0 0.0
    %123 = vmatprep.subr.mxu0 0.0
    %124 = vmatpush2.msra.mxu0 0.0
    %125 = vmatprep.subr.mxu0 0.0
    %126 = vmatpush2.msra.mxu0 0.0
    %127 = vmatprep.subr.mxu0 0.0
    %128 = vmatpush2.msra.mxu0 0.0
    %129 = vmatprep.subr.mxu0 0.0
    %130 = vmatpush2.msra.mxu0 0.0
    %131 = vmatprep.subr.mxu0 0.0
    %132 = vmatpush2.msra.mxu0 0.0
    %133 = vmatprep.subr.mxu0 0.0
    %134 = vmatpush2.msra.mxu0 0.0
    %135 = vmatprep.subr.mxu0 0.0
    %136 = vmatpush2.msra.mxu0 0.0
    %137 = vmatprep.subr.mxu0 0.0
    %138 = vmatpush2.msra.mxu0 0.0
    %139 = vmatprep.subr.mxu0 0.0
    %140 = vmatpush2.msra.mxu0 0.0
    %141 = vmatprep.mubr.f32.mxu0 0.0
    %142 = vmatmul.mubr.f32.gmra.mxu0 %v72
    %v143 = vpop.f32.mrf.mxu0
    %v144 = vadd.f32 0.0, %v143
    %v145 = vpop.f32.mrf.mxu0
    %146 = vmatprep.mubr.f32.mxu0 0.0
    %147 = vmatmul.mubr.f32.gmra.mxu0 %v75
    %v148 = vpop.f32.mrf.mxu0
    %v149 = vadd.f32 0.0, %v148
    %v150 = vpop.f32.mrf.mxu0
    %151 = vdwg.mxu0
    %v152 = vadd.f32 %v62, %v144
    %v153 = vadd.f32 %v63, %v149
    %154 = vst [vmem:[#allocation2] sm:$0xff] %v152
    %155 = vst [vmem:[#allocation2 + $0x8] sm:$0xff] %v153
    // Predicated region
    $region30: #{tpu_custom_call.1} parent=1 // pred_check
      %p156 = pneg %p56
    $region31: #{tpu_custom_call.1} parent=1 // pred_check_branch
      %158 = sbr.rel (%p156) target = $region33
    $region32: #{tpu_custom_call.1} parent=1 // pred_region
      %v159 = vld [vmem:[#allocation2] sm:$0xff]
      %v160 = vld [vmem:[#allocation2 + $0x8] sm:$0xff]
      %v161 = vld [vmem:[#allocation8] sm:$0xff]
      %v162 = vld [vmem:[#allocation8 + $0x8] sm:$0xff]
      %v163 = vadd.f32 %v159, %v161
      %v164 = vadd.f32 %v160, %v162
      %165 = vst [vmem:[#allocation9] sm:$0xff] %v163
      %166 = vst [vmem:[#allocation9 + $0x8] sm:$0xff] %v164
    $region33: #{tpu_custom_call.1} parent=1 // pred_fallthru
      _
    // Predicated region
    $region34: #{tpu_custom_call.1} parent=1 // pred_check
      _
    $region35: #{tpu_custom_call.1} parent=1 // pred_check_branch
      %168 = sbr.rel (0) target = $region37
    $region36: #{tpu_custom_call.1} parent=1 // pred_region
      %s170 = ssub.s32 256, 256
      %171 = vsyncadd [#allocation5], %s170
      %s172 = sshll.u32 [#allocation9], 4
      %s173 = int_to_ptr.vmem [resolvable:$true] %s172
      %178 = dma.vmem_to_hbm [thread:$0]  %s173, 256, %s3, [#allocation5], 128, 128, 8
    $region37: #{tpu_custom_call.1} parent=1 // pred_fallthru
      _
    // Predicated region
    $region38: #{tpu_custom_call.1} parent=1 // pred_check
      _
    $region39: #{tpu_custom_call.1} parent=1 // pred_check_branch
      %180 = sbr.rel (0) target = $region41
    $region40: #{tpu_custom_call.1} parent=1 // pred_region
      %181 = dma.done [#allocation5], 256
    $region41: #{tpu_custom_call.1} parent=1 // pred_fallthru
      _
    %182 = vsyncpa [#allocation4], 1
    %183 = vsyncpa [#allocation7], 1
    %184 = vsyncpa [#allocation5], 1

</llo_original>
